<compile_context>
chip_gen: v7x
topology: tpu7x:2x2x1
jax: 0.10.0
libtpu: 0.0.40
codegen_flags: <defaults>
</compile_context>

<pallas_src>
import jax
import jax.numpy as jnp
from jax.experimental import pallas as pl
from jax.experimental.pallas import tpu as pltpu


def _make_sampler_kernel(vocab_size: int, tv: int, n_vocab_blocks: int):
    def kernel(logits_ref, temps_ref, noise_ref, out_ref, max_sc, idx_sc):
        v_blk = pl.program_id(1)

        @pl.when(v_blk == 0)
        def _init():
            max_sc[...] = jnp.full(max_sc.shape, -jnp.inf, dtype=max_sc.dtype)
            idx_sc[...] = jnp.zeros(idx_sc.shape, dtype=idx_sc.dtype)

        temps = temps_ref[...]                                    # (TB, 1) f32
        greedy_row = temps == 0.0
        safe_t = jnp.where(greedy_row, jnp.float32(1.0), temps)
        inv_t = jnp.float32(1.0) / safe_t                         # (TB, 1)

        # scale per-row (argmax-invariant for greedy rows since inv_t == 1)
        scaled = logits_ref[...].astype(jnp.float32) * inv_t      # (TB, TV)
        noise = jnp.where(greedy_row, jnp.float32(0.0), noise_ref[...])
        keys = scaled + noise

        # global vocab indices for this tile; mask any padding past V
        lane = jax.lax.broadcasted_iota(jnp.int32, keys.shape, 1)
        gidx = lane + v_blk * tv
        keys = jnp.where(gidx < vocab_size, keys, -jnp.inf)

        # first-occurrence argmax within this tile
        tile_max = jnp.max(keys, axis=-1, keepdims=True)          # (TB, 1)
        tile_arg = jnp.min(
            jnp.where(keys == tile_max, gidx, jnp.int32(vocab_size)),
            axis=-1, keepdims=True)                               # (TB, 1)

        # merge with running carry; strict '>' keeps earlier tiles on ties
        better = tile_max > max_sc[...]
        max_sc[...] = jnp.where(better, tile_max, max_sc[...])
        idx_sc[...] = jnp.where(better, tile_arg, idx_sc[...])

        @pl.when(v_blk == n_vocab_blocks - 1)
        def _finalize():
            out_ref[...] = idx_sc[...]

    return kernel


def sampler_forward(logits, temperatures, rng_key, *, tb=None, tv=None):
    """logits: (B, V) any float dtype, temperatures: (B,) -> (B,) int32."""
    B, V = logits.shape
    temps2d = temperatures.astype(jnp.float32).reshape(B, 1)

    # Exp(1) noise (matches torch.empty_like(probs).exponential_(1)); fold the
    # reference's  probs / (E + 1e-10)  into additive log-space noise.
    exp_noise = jax.random.exponential(rng_key, (B, V), dtype=jnp.float32)
    gumbel_noise = -jnp.log(exp_noise + jnp.float32(1e-10))

    # Tile sizes: batch blocks of <=16 rows (8/16-sublane friendly), vocab
    # blocks of <=8192 lanes (multiple of 128); padding is masked in-kernel.
    if tb is None:
        tb = B if B <= 16 else 16
    if tv is None:
        tv = V if V <= 8192 else 8192

    grid = (pl.cdiv(B, tb), pl.cdiv(V, tv))
    kernel = _make_sampler_kernel(V, tv, grid[1])

    out = pl.pallas_call(
        kernel,
        out_shape=jax.ShapeDtypeStruct((B, 1), jnp.int32),
        grid=grid,
        in_specs=[
            pl.BlockSpec((tb, tv), lambda b, v: (b, v)),   # logits (native dtype)
            pl.BlockSpec((tb, 1), lambda b, v: (b, 0)),    # temperatures
            pl.BlockSpec((tb, tv), lambda b, v: (b, v)),   # additive noise
        ],
        out_specs=pl.BlockSpec((tb, 1), lambda b, v: (b, 0)),
        scratch_shapes=[
            pltpu.VMEM((tb, 1), jnp.float32),   # running max
            pltpu.VMEM((tb, 1), jnp.int32),     # running argmax
        ],
        compiler_params=pltpu.CompilerParams(
            dimension_semantics=("parallel", "arbitrary")),
    )(logits, temps2d, gumbel_noise)

    return out[:, 0]


if __name__ == "__main__":
    key = jax.random.PRNGKey(0)
    k_logits, k_noise = jax.random.split(key)

    B, V = 8, 512
    logits = jax.random.normal(k_logits, (B, V), dtype=jnp.float32) * 4.0
    # mix of greedy (temp == 0) and sampling rows
    temperatures = jnp.array([0.0, 0.7, 1.0, 0.0, 1.3, 0.5, 2.0, 0.0],
                             dtype=jnp.float32)

    # tv=128 -> 4 vocab blocks, exercising the streaming argmax carry.
    tokens = sampler_forward(logits, temperatures, k_noise, tv=128)
    tokens = jax.block_until_ready(tokens)

    assert tokens.shape == (B,) and tokens.dtype == jnp.int32
    assert bool(jnp.all((tokens >= 0) & (tokens < V)))

    # greedy rows must exactly match argmax of raw logits
    ref_greedy = jnp.argmax(logits, axis=-1).astype(jnp.int32)
    greedy_rows = temperatures == 0.0
    assert bool(jnp.all(jnp.where(greedy_rows, tokens == ref_greedy, True))), \
        "greedy rows mismatch"

    # sampled rows: cross-check against a pure-JAX reference that follows the
    # PyTorch formula exactly, using the same Exp(1) noise stream.
    exp_noise = jax.random.exponential(k_noise, (B, V), dtype=jnp.float32)
    safe_t = jnp.where(temperatures == 0.0, 1.0, temperatures)[:, None]
    probs = jax.nn.softmax(logits / safe_t, axis=-1)
    ref_sample = jnp.argmax(probs / (exp_noise + 1e-10), axis=-1).astype(jnp.int32)
    ref = jnp.where(greedy_rows, ref_greedy, ref_sample)
    assert bool(jnp.all(tokens == ref)), (tokens, ref)

    print("KERNEL_OK")
</pallas_src>

<mosaic_0001>
module attributes {stable_mosaic.version = 11 : i64} {
  func.func @kernel(%arg0: i32, %arg1: i32, %arg2: memref<8x128xf32, #tpu.memory_space<vmem>>, %arg3: memref<8x1xf32, #tpu.memory_space<vmem>>, %arg4: memref<8x128xf32, #tpu.memory_space<vmem>>, %arg5: memref<8x1xi32, #tpu.memory_space<vmem>>, %arg6: memref<8x1xf32, #tpu.memory_space<vmem>>, %arg7: memref<8x1xi32, #tpu.memory_space<vmem>>) attributes {dimension_semantics = [#tpu.dimension_semantics<parallel>, #tpu.dimension_semantics<arbitrary>], iteration_bounds = array<i64: 1, 4>, scalar_prefetch = 0 : i64, scratch_operands = 2 : i64, tpu.core_type = #tpu.core_type<tc>, window_params = [{transform_indices = @transform_0, window_bounds = array<i64: 8, 128>}, {transform_indices = @transform_1, window_bounds = array<i64: 8, 1>}, {transform_indices = @transform_2, window_bounds = array<i64: 8, 128>}, {transform_indices = @transform_3, window_bounds = array<i64: 8, 1>}]} {
    %c0_i32 = arith.constant 0 : i32
    %0 = arith.cmpi eq, %arg1, %c0_i32 : i32
    %1 = arith.extui %0 : i1 to i32
    %c0_i32_0 = arith.constant 0 : i32
    %2 = arith.cmpi ne, %1, %c0_i32_0 : i32
    scf.if %2 {
      %cst_24 = arith.constant 0xFF800000 : f32
      %46 = vector.broadcast %cst_24 : f32 to vector<8x1xf32>
      %c0_25 = arith.constant 0 : index
      %c0_26 = arith.constant 0 : index
      %47 = vector.load %arg6[%c0_25, %c0_26] : memref<8x1xf32, #tpu.memory_space<vmem>>, vector<8x1xf32>
      tpu.vector_store %arg6[%c0_25, %c0_26], %46 {strides = array<i32>} : memref<8x1xf32, #tpu.memory_space<vmem>>, vector<8x1xf32>,
      %c0_i32_27 = arith.constant 0 : i32
      %48 = vector.broadcast %c0_i32_27 : i32 to vector<8x1xi32>
      %c0_28 = arith.constant 0 : index
      %c0_29 = arith.constant 0 : index
      %49 = vector.load %arg7[%c0_28, %c0_29] : memref<8x1xi32, #tpu.memory_space<vmem>>, vector<8x1xi32>
      tpu.vector_store %arg7[%c0_28, %c0_29], %48 {strides = array<i32>} : memref<8x1xi32, #tpu.memory_space<vmem>>, vector<8x1xi32>,
    } else {
    }
    %c0 = arith.constant 0 : index
    %c0_1 = arith.constant 0 : index
    %3 = vector.load %arg3[%c0, %c0_1] : memref<8x1xf32, #tpu.memory_space<vmem>>, vector<8x1xf32>
    %cst = arith.constant 0.000000e+00 : f32
    %4 = vector.broadcast %cst : f32 to vector<8x1xf32>
    %5 = arith.cmpf oeq, %3, %4 : vector<8x1xf32>
    %cst_2 = arith.constant 1.000000e+00 : f32
    %6 = vector.broadcast %cst_2 : f32 to vector<8x1xf32>
    %7 = arith.select %5, %6, %3 : vector<8x1xi1>, vector<8x1xf32>
    %cst_3 = arith.constant 1.000000e+00 : f32
    %8 = vector.broadcast %cst_3 : f32 to vector<8x1xf32>
    %9 = arith.divf %8, %7 : vector<8x1xf32>
    %c0_4 = arith.constant 0 : index
    %c0_5 = arith.constant 0 : index
    %10 = vector.load %arg2[%c0_4, %c0_5] : memref<8x128xf32, #tpu.memory_space<vmem>>, vector<8x128xf32>
    %11 = vector.broadcast %9 : vector<8x1xf32> to vector<8x128xf32>
    %12 = arith.mulf %10, %11 : vector<8x128xf32>
    %c0_6 = arith.constant 0 : index
    %c0_7 = arith.constant 0 : index
    %13 = vector.load %arg4[%c0_6, %c0_7] : memref<8x128xf32, #tpu.memory_space<vmem>>, vector<8x128xf32>
    %cst_8 = arith.constant 0.000000e+00 : f32
    %14 = vector.shape_cast %5 : vector<8x1xi1> to vector<8x1xi1>
    %15 = vector.broadcast %14 : vector<8x1xi1> to vector<8x128xi1>
    %16 = vector.broadcast %cst_8 : f32 to vector<8x128xf32>
    %17 = arith.select %15, %16, %13 : vector<8x128xi1>, vector<8x128xf32>
    %18 = arith.addf %12, %17 : vector<8x128xf32>
    %19 = tpu.iota {dimensions = array<i32: 1>} : vector<8x128xi32>
    %c128_i32 = arith.constant 128 : i32
    %20 = arith.muli %arg1, %c128_i32 : i32
    %21 = vector.broadcast %20 : i32 to vector<8x128xi32>
    %22 = arith.addi %19, %21 : vector<8x128xi32>
    %c512_i32 = arith.constant 512 : i32
    %23 = vector.broadcast %c512_i32 : i32 to vector<8x128xi32>
    %24 = arith.cmpi slt, %22, %23 : vector<8x128xi32>
    %cst_9 = arith.constant 0xFF800000 : f32
    %25 = vector.broadcast %cst_9 : f32 to vector<8x128xf32>
    %26 = arith.select %24, %18, %25 : vector<8x128xi1>, vector<8x128xf32>
    %cst_10 = arith.constant dense<0xFF800000> : vector<8xf32>
    %27 = vector.multi_reduction <maximumf>, %26, %cst_10 [1] : vector<8x128xf32> to vector<8xf32>
    %28 = vector.shape_cast %27 : vector<8xf32> to vector<8x1xf32>
    %29 = vector.broadcast %28 : vector<8x1xf32> to vector<8x128xf32>
    %30 = arith.cmpf oeq, %26, %29 : vector<8x128xf32>
    %c512_i32_11 = arith.constant 512 : i32
    %31 = vector.broadcast %c512_i32_11 : i32 to vector<8x128xi32>
    %32 = arith.select %30, %22, %31 : vector<8x128xi1>, vector<8x128xi32>
    %cst_12 = arith.constant dense<2147483647> : vector<8xi32>
    %33 = vector.multi_reduction <minsi>, %32, %cst_12 [1] : vector<8x128xi32> to vector<8xi32>
    %34 = vector.shape_cast %33 : vector<8xi32> to vector<8x1xi32>
    %c0_13 = arith.constant 0 : index
    %c0_14 = arith.constant 0 : index
    %35 = vector.load %arg6[%c0_13, %c0_14] : memref<8x1xf32, #tpu.memory_space<vmem>>, vector<8x1xf32>
    %36 = arith.cmpf ogt, %28, %35 : vector<8x1xf32>
    %c0_15 = arith.constant 0 : index
    %c0_16 = arith.constant 0 : index
    %37 = vector.load %arg6[%c0_15, %c0_16] : memref<8x1xf32, #tpu.memory_space<vmem>>, vector<8x1xf32>
    %38 = arith.select %36, %28, %37 : vector<8x1xi1>, vector<8x1xf32>
    %c0_17 = arith.constant 0 : index
    %c0_18 = arith.constant 0 : index
    %39 = vector.load %arg6[%c0_17, %c0_18] : memref<8x1xf32, #tpu.memory_space<vmem>>, vector<8x1xf32>
    tpu.vector_store %arg6[%c0_17, %c0_18], %38 {strides = array<i32>} : memref<8x1xf32, #tpu.memory_space<vmem>>, vector<8x1xf32>,
    %c0_19 = arith.constant 0 : index
    %c0_20 = arith.constant 0 : index
    %40 = vector.load %arg7[%c0_19, %c0_20] : memref<8x1xi32, #tpu.memory_space<vmem>>, vector<8x1xi32>
    %41 = arith.select %36, %34, %40 : vector<8x1xi1>, vector<8x1xi32>
    %c0_21 = arith.constant 0 : index
    %c0_22 = arith.constant 0 : index
    %42 = vector.load %arg7[%c0_21, %c0_22] : memref<8x1xi32, #tpu.memory_space<vmem>>, vector<8x1xi32>
    tpu.vector_store %arg7[%c0_21, %c0_22], %41 {strides = array<i32>} : memref<8x1xi32, #tpu.memory_space<vmem>>, vector<8x1xi32>,
    %c3_i32 = arith.constant 3 : i32
    %43 = arith.cmpi eq, %arg1, %c3_i32 : i32
    %44 = arith.extui %43 : i1 to i32
    %c0_i32_23 = arith.constant 0 : i32
    %45 = arith.cmpi ne, %44, %c0_i32_23 : i32
    scf.if %45 {
      %c0_24 = arith.constant 0 : index
      %c0_25 = arith.constant 0 : index
      %46 = vector.load %arg7[%c0_24, %c0_25] : memref<8x1xi32, #tpu.memory_space<vmem>>, vector<8x1xi32>
      %c0_26 = arith.constant 0 : index
      %c0_27 = arith.constant 0 : index
      %47 = vector.load %arg5[%c0_26, %c0_27] : memref<8x1xi32, #tpu.memory_space<vmem>>, vector<8x1xi32>
      tpu.vector_store %arg5[%c0_26, %c0_27], %46 {strides = array<i32>} : memref<8x1xi32, #tpu.memory_space<vmem>>, vector<8x1xi32>,
    } else {
    }
    return
  }
  func.func @transform_0(%arg0: i32, %arg1: i32) -> (i32, i32) {
    %c0_i32 = arith.constant 0 : i32
    return %arg0, %arg1 : i32, i32
  }
  func.func @transform_1(%arg0: i32, %arg1: i32) -> (i32, i32) {
    %c0_i32 = arith.constant 0 : i32
    %c0_i32_0 = arith.constant 0 : i32
    return %arg0, %c0_i32 : i32, i32
  }
  func.func @transform_2(%arg0: i32, %arg1: i32) -> (i32, i32) {
    %c0_i32 = arith.constant 0 : i32
    return %arg0, %arg1 : i32, i32
  }
  func.func @transform_3(%arg0: i32, %arg1: i32) -> (i32, i32) {
    %c0_i32 = arith.constant 0 : i32
    %c0_i32_0 = arith.constant 0 : i32
    return %arg0, %c0_i32 : i32, i32
  }
}

</mosaic_0001>

<llo_original>
// kernel: tpu_custom_call.1
$region0: #{tpu_custom_call.1}
  #allocation0 [shape = 'u32[]', space=smem, size = 0x4, offset = 0x4, fixed_abs, tag = 'smem constant byte address 0x4 - core index']
  #allocation1 [shape = 'u32[144,128]{1,0:T(1,128)}', space=vmem, size = 0x12000, scoped, tag = 'internal scratch']
  #allocation2 [shape = 'f32[8,1]{1,0:T(8,128)}', space=vmem, size = 0x1000, scoped, tag = 'scratch operand']
  #allocation3 [shape = 's32[8,1]{1,0:T(8,128)}', space=vmem, size = 0x1000, scoped, tag = 'scratch operand']
  %s0 = inlined_call_operand.hbm [shape: f32[8,512], index: 0, kind: input, shape index: {}]
  %s1 = inlined_call_operand.vmem [shape: f32[8,1], index: 1, kind: input, shape index: {}]
  %s2 = inlined_call_operand.hbm [shape: f32[8,512], index: 2, kind: input, shape index: {}]
  %s3 = inlined_call_operand.vmem [shape: s32[8,1], index: 3, kind: output, shape index: {}]
  %s4 = sld [smem:[#allocation0]]
  $region61: #{tpu_custom_call.1} parent=0
    _
  %s6 = ssub.s32 1, %s4
  %s7 = scalar_select 0, %s6, %s4
  $region1: #{tpu_custom_call.1} parent=0
    #allocation4 [shape = 'u8[8192]{0}', space=vmem, size = 0x2000, scoped, tag = 'input window, operand 0']
    #allocation5 [shape = 's32[2]{0}', space=sflag, size = 0x8, scoped, tag = 'scoped memory for tpu_custom_call.1']
    #allocation6 [shape = 'u8[8192]{0}', space=vmem, size = 0x2000, scoped, tag = 'input window, operand 2']
    #allocation7 [shape = 's32[2]{0}', space=sflag, size = 0x8, scoped, tag = 'scoped memory for tpu_custom_call.1']
    %8 = vsyncpa [#allocation5], 0
    %s9 = scalar_lea.sflag [#allocation5], 1
    %10 = vsyncpa %s9, 0
    %11 = vsyncpa [#allocation7], 0
    %s12 = scalar_lea.sflag [#allocation7], 1
    %13 = vsyncpa %s12, 0
    loop: start=0, step=1, limit=6
    $region2: #{tpu_custom_call.1} parent=1 // loop_pre_header
      _
    $region3: #{tpu_custom_call.1} parent=1 // loop_header
      %s15 = sphi 0, %s19
      %p16 = scmp.ge.s32.totalorder %s15, 6
      %s22 = sphi 0, %s34
      %s23 = sphi 0, %s30
      %s24 = sphi 0, %s22
      %s25 = sphi 0, %s23
      %s26 = sphi 0, %s24
      %s27 = sphi 0, %s25
      %s39 = sphi 0, %s41
      %s42 = sphi 0, %s39
      %s43 = sphi 0, %s42
      %s59 = sphi 0, %s43
      %s65 = sphi 0, %s67
      %s68 = sphi 0, %s65
      %s69 = sphi 0, %s68
      %s85 = sphi 0, %s69
      %s93 = sphi 0, %s95
      %s96 = sphi 0, %s93
      %s97 = sphi 0, %s96
      %s113 = sphi 0, %s97
      %s119 = sphi 0, %s121
      %s122 = sphi 0, %s119
      %s123 = sphi 0, %s122
      %s139 = sphi 0, %s123
    $region4: #{tpu_custom_call.1} parent=1 // loop_header_branch
      %18 = sbr.rel (%p16) target = $region8
    $region5: #{tpu_custom_call.1} parent=1 // loop_body
      %s20 = ssub.s32 %s15, 1
      %s21 = ssub.s32 %s15, 2
      %s28 = sadd.s32 1, %s23
      %p29 = scmp.ge.s32.totalorder %s28, 4
      %s30 = scalar_select %p29, 0, %s28
      %s31 = sadd.s32 1, %s22
      %s32 = scalar_select %p29, %s31, %s22
      %p33 = scmp.ge.s32.totalorder %s32, 1
      %s34 = scalar_select %p33, 0, %s32
      %s35 = ssub.s32 %s22, %s34
      %s36 = ssub.s32 %s23, %s30
      %s37 = sor.u32 %s35, %s36
      %p38 = scmp.eq.s32.totalorder %s37, 0
      %s40 = sadd.s32 %s39, 1
      %s41 = scalar_select %p38, %s39, %s40
      %p44 = pneg %p38
      %p45 = scmp.eq.s32.totalorder %s15, 3
      %p46 = por %p44, %p45
      %p47 = scmp.ne.s32.totalorder %s39, %s42
      %p48 = scmp.eq.s32.totalorder %s15, 0
      %p49 = por %p47, %p48
      %p50 = scmp.ne.s32.totalorder %s39, %s42
      %p51 = scmp.eq.s32.totalorder %s20, 3
      %p52 = por %p50, %p51
      %p53 = scmp.ne.s32.totalorder %s42, %s43
      %p54 = scmp.eq.s32.totalorder %s20, 0
      %p55 = por %p53, %p54
      %p56 = scmp.ne.s32.totalorder %s42, %s43
      %p57 = scmp.eq.s32.totalorder %s21, 3
      %p58 = por %p56, %p57
      %p60 = scmp.ne.s32.totalorder %s43, %s59
      %p61 = scmp.eq.s32.totalorder %s21, 0
      %p62 = por %p60, %p61
      %s63 = ssub.s32 %s22, %s34
      %p64 = scmp.eq.s32.totalorder %s63, 0
      %s66 = sadd.s32 %s65, 1
      %s67 = scalar_select %p64, %s65, %s66
      %p70 = pneg %p64
      %p71 = scmp.eq.s32.totalorder %s15, 3
      %p72 = por %p70, %p71
      %p73 = scmp.ne.s32.totalorder %s65, %s68
      %p74 = scmp.eq.s32.totalorder %s15, 0
      %p75 = por %p73, %p74
      %p76 = scmp.ne.s32.totalorder %s65, %s68
      %p77 = scmp.eq.s32.totalorder %s20, 3
      %p78 = por %p76, %p77
      %p79 = scmp.ne.s32.totalorder %s68, %s69
      %p80 = scmp.eq.s32.totalorder %s20, 0
      %p81 = por %p79, %p80
      %p82 = scmp.ne.s32.totalorder %s68, %s69
      %p83 = scmp.eq.s32.totalorder %s21, 3
      %p84 = por %p82, %p83
      %p86 = scmp.ne.s32.totalorder %s69, %s85
      %p87 = scmp.eq.s32.totalorder %s21, 0
      %p88 = por %p86, %p87
      %s89 = ssub.s32 %s22, %s34
      %s90 = ssub.s32 %s23, %s30
      %s91 = sor.u32 %s89, %s90
      %p92 = scmp.eq.s32.totalorder %s91, 0
      %s94 = sadd.s32 %s93, 1
      %s95 = scalar_select %p92, %s93, %s94
      %p98 = pneg %p92
      %p99 = scmp.eq.s32.totalorder %s15, 3
      %p100 = por %p98, %p99
      %p101 = scmp.ne.s32.totalorder %s93, %s96
      %p102 = scmp.eq.s32.totalorder %s15, 0
      %p103 = por %p101, %p102
      %p104 = scmp.ne.s32.totalorder %s93, %s96
      %p105 = scmp.eq.s32.totalorder %s20, 3
      %p106 = por %p104, %p105
      %p107 = scmp.ne.s32.totalorder %s96, %s97
      %p108 = scmp.eq.s32.totalorder %s20, 0
      %p109 = por %p107, %p108
      %p110 = scmp.ne.s32.totalorder %s96, %s97
      %p111 = scmp.eq.s32.totalorder %s21, 3
      %p112 = por %p110, %p111
      %p114 = scmp.ne.s32.totalorder %s97, %s113
      %p115 = scmp.eq.s32.totalorder %s21, 0
      %p116 = por %p114, %p115
      %s117 = ssub.s32 %s22, %s34
      %p118 = scmp.eq.s32.totalorder %s117, 0
      %s120 = sadd.s32 %s119, 1
      %s121 = scalar_select %p118, %s119, %s120
      %p124 = pneg %p118
      %p125 = scmp.eq.s32.totalorder %s15, 3
      %p126 = por %p124, %p125
      %p127 = scmp.ne.s32.totalorder %s119, %s122
      %p128 = scmp.eq.s32.totalorder %s15, 0
      %p129 = por %p127, %p128
      %p130 = scmp.ne.s32.totalorder %s119, %s122
      %p131 = scmp.eq.s32.totalorder %s20, 3
      %p132 = por %p130, %p131
      %p133 = scmp.ne.s32.totalorder %s122, %s123
      %p134 = scmp.eq.s32.totalorder %s20, 0
      %p135 = por %p133, %p134
      %p136 = scmp.ne.s32.totalorder %s122, %s123
      %p137 = scmp.eq.s32.totalorder %s21, 3
      %p138 = por %p136, %p137
      %p140 = scmp.ne.s32.totalorder %s123, %s139
      %p141 = scmp.eq.s32.totalorder %s21, 0
      %p142 = por %p140, %p141
      %p143 = scmp.le.s32.totalorder 1, %s15
      %p144 = scmp.lt.s32.totalorder %s15, 5
      %p145 = pnand %p143, %p144
      %p146 = pneg %p145
      // Predicated region
      $region9: #{tpu_custom_call.1} parent=5 // pred_check
        _
      $region10: #{tpu_custom_call.1} parent=5 // pred_check_branch
        %148 = sbr.rel (%p145) target = $region12
      $region11: #{tpu_custom_call.1} parent=5 // pred_region
        %s149 = ssub.s32 %s15, 1
        // Predicated region
        $region13: #{tpu_custom_call.1} parent=11 // pred_check
          %p150 = pneg %p81
        $region14: #{tpu_custom_call.1} parent=11 // pred_check_branch
          %152 = sbr.rel (%p150) target = $region16
        $region15: #{tpu_custom_call.1} parent=11 // pred_region
          %p153 = scmp.lt.s32.totalorder %s24, 0
          %s154 = scalar_select %p153, %s24, 0
          %s155 = smul.addr %s154, 8
          %s156 = scalar_lea.vmem %s1, %s155
        $region16: #{tpu_custom_call.1} parent=11 // pred_fallthru
          _
      $region12: #{tpu_custom_call.1} parent=5 // pred_fallthru
        _
      %p157 = scmp.lt.s32.totalorder %s15, 4
      // Predicated region
      $region17: #{tpu_custom_call.1} parent=5 // pred_check
        %p158 = pneg %p157
      $region18: #{tpu_custom_call.1} parent=5 // pred_check_branch
        %160 = sbr.rel (%p158) target = $region20
      $region19: #{tpu_custom_call.1} parent=5 // pred_region
        // Predicated region
        $region21: #{tpu_custom_call.1} parent=19 // pred_check
          %p161 = pneg %p49
        $region22: #{tpu_custom_call.1} parent=19 // pred_check_branch
          %163 = sbr.rel (%p161) target = $region24
        $region23: #{tpu_custom_call.1} parent=19 // pred_region
          %s164 = sand.u32 %s39, 1
          %s165 = scalar_lea.sflag [#allocation5], %s164
          %s166 = sand.u32 %s39, 1
          %s167 = smul.addr %s166, 8
          %s168 = scalar_lea.vmem [#allocation4], %s167
          %s170 = ssub.s32 128, 128
          %171 = vsyncadd %s165, %s170
          %s172 = smul.addr %s22, 4
          %s173 = sadd.s32 %s23, %s172
          %s174 = smul.addr %s173, 128
          %s175 = scalar_lea.hbm %s0, %s174
          %s177 = sshll.u32 %s168, 4
          %s178 = int_to_ptr.vmem [resolvable:$true] %s177
          %180 = dma.hbm_to_vmem [thread:$0]  %s175, 128, %s178, %s165
        $region24: #{tpu_custom_call.1} parent=19 // pred_fallthru
          _
        // Predicated region
        $region25: #{tpu_custom_call.1} parent=19 // pred_check
          %p181 = pneg %p103
        $region26: #{tpu_custom_call.1} parent=19 // pred_check_branch
          %183 = sbr.rel (%p181) target = $region28
        $region27: #{tpu_custom_call.1} parent=19 // pred_region
          %s184 = sand.u32 %s93, 1
          %s185 = scalar_lea.sflag [#allocation7], %s184
          %s186 = sand.u32 %s93, 1
          %s187 = smul.addr %s186, 8
          %s188 = scalar_lea.vmem [#allocation6], %s187
          %s190 = ssub.s32 128, 128
          %191 = vsyncadd %s185, %s190
          %s192 = smul.addr %s22, 4
          %s193 = sadd.s32 %s23, %s192
          %s194 = smul.addr %s193, 128
          %s195 = scalar_lea.hbm %s2, %s194
          %s197 = sshll.u32 %s188, 4
          %s198 = int_to_ptr.vmem [resolvable:$true] %s197
          %200 = dma.hbm_to_vmem [thread:$0]  %s195, 128, %s198, %s185
        $region28: #{tpu_custom_call.1} parent=19 // pred_fallthru
          _
      $region20: #{tpu_custom_call.1} parent=5 // pred_fallthru
        _
      %p201 = scmp.le.s32.totalorder 1, %s15
      %p202 = scmp.lt.s32.totalorder %s15, 5
      %p203 = pnand %p201, %p202
      %p204 = pneg %p203
      // Predicated region
      $region29: #{tpu_custom_call.1} parent=5 // pred_check
        _
      $region30: #{tpu_custom_call.1} parent=5 // pred_check_branch
        %206 = sbr.rel (%p203) target = $region32
      $region31: #{tpu_custom_call.1} parent=5 // pred_region
        %s207 = ssub.s32 %s15, 1
        %s208 = sand.u32 %s42, 1
        %s209 = scalar_lea.sflag [#allocation5], %s208
        %s210 = sand.u32 %s42, 1
        %s211 = smul.addr %s210, 8
        %s212 = scalar_lea.vmem [#allocation4], %s211
        // Predicated region
        $region33: #{tpu_custom_call.1} parent=31 // pred_check
          %p213 = pneg %p55
        $region34: #{tpu_custom_call.1} parent=31 // pred_check_branch
          %215 = sbr.rel (%p213) target = $region36
        $region35: #{tpu_custom_call.1} parent=31 // pred_region
          %216 = dma.done %s209, 128
        $region36: #{tpu_custom_call.1} parent=31 // pred_fallthru
          _
        %s217 = sand.u32 %s96, 1
        %s218 = scalar_lea.sflag [#allocation7], %s217
        %s219 = sand.u32 %s96, 1
        %s220 = smul.addr %s219, 8
        %s221 = scalar_lea.vmem [#allocation6], %s220
        // Predicated region
        $region37: #{tpu_custom_call.1} parent=31 // pred_check
          %p222 = pneg %p109
        $region38: #{tpu_custom_call.1} parent=31 // pred_check_branch
          %224 = sbr.rel (%p222) target = $region40
        $region39: #{tpu_custom_call.1} parent=31 // pred_region
          %225 = dma.done %s218, 128
        $region40: #{tpu_custom_call.1} parent=31 // pred_fallthru
          _
        %s226 = sand.u32 %s42, 1
        %s227 = scalar_lea.sflag [#allocation5], %s226
        %s228 = sand.u32 %s42, 1
        %s229 = smul.addr %s228, 8
        %s230 = scalar_lea.vmem [#allocation4], %s229
        %p231 = pneg %p55
        %p232 = pneg %p52
        %p233 = scmp.lt.s32.totalorder %s24, 0
        %s234 = scalar_select %p233, %s24, 0
        %s235 = smul.addr %s234, 8
        %s236 = scalar_lea.vmem %s1, %s235
        %p237 = pneg %p81
        %p238 = pneg %p78
        %s239 = sand.u32 %s96, 1
        %s240 = scalar_lea.sflag [#allocation7], %s239
        %s241 = sand.u32 %s96, 1
        %s242 = smul.addr %s241, 8
        %s243 = scalar_lea.vmem [#allocation6], %s242
        %p244 = pneg %p109
        %p245 = pneg %p106
        %p246 = pneg %p135
        %p247 = pneg %p132
        %p248 = scmp.lt.s32.totalorder %s24, 0
        %s249 = scalar_select %p248, %s24, 0
        %s250 = smul.addr %s249, 8
        %s251 = scalar_lea.vmem %s3, %s250
        %p252 = scmp.lt.s32.totalorder %s24, 0
        %s253 = scalar_select %p252, %s24, 0
        %s254 = smul.addr %s253, 8
        %s255 = scalar_lea.vmem %s1, %s254
        %p256 = scmp.lt.s32.totalorder %s24, 0
        %s257 = scalar_select %p256, %s24, 0
        %s258 = smul.addr %s257, 8
        %s259 = scalar_lea.vmem %s3, %s258
        %p260 = scmp.eq.s32.totalorder %s25, 0
        // Predicated region
        $region41: #{tpu_custom_call.1} parent=31 // pred_check
          %p261 = pneg %p260
        $region42: #{tpu_custom_call.1} parent=31 // pred_check_branch
          %263 = sbr.rel (%p261) target = $region44
        $region43: #{tpu_custom_call.1} parent=31 // pred_region
          %vm264 = vcmask 7168
          %265 = vst.msk [vmem:[#allocation2] sm:$0xff] %vm264, -inf
          %266 = vst.msk [vmem:[#allocation3] sm:$0xff] %vm264, 0
        $region44: #{tpu_custom_call.1} parent=31 // pred_fallthru
          _
        %v267 = vld [vmem:[%s255] sm:$0xff]
        %vm268 = vcmp.eq.f32.partialorder %v267, 0.0
        %v269 = vsel %vm268, 1.0, %v267
        %v270 = vrcp.pop %v269
        %v271 = vmul.f32 1.0, %v270
        %v272 = vld [vmem:[%s212] sm:$0xff]
        %274 = vset.pattern.permute.xlu0 0
        %275 = vperm.xlu0 %274, %v271
        %v276 = vpop.permute.xlu0 %275
        %v278 = vmul.f32 %v272, %v276
        %v279 = vld [vmem:[%s221] sm:$0xff]
        %v280 = vsel %vm268, 1, 0
        %281 = vset.pattern.permute.xlu0 0
        %282 = vperm.xlu0 %281, %v280
        %v283 = vpop.permute.xlu0 %282
        %vm284 = vcmp.eq.s32.totalorder %v283, 1
        %v285 = vsel %vm284, 0.0, %v279
        %v286 = vadd.f32 %v278, %v285
        %v287 = vlaneseq
        %v288 = vand.u32 %v287, 127
        %s289 = smul.u32 %s25, 128
        %v290 = vstv %s289
        %v291 = vadd.s32 %v288, %v290
        %vm292 = vcmp.lt.s32.totalorder %v291, 512
        %v293 = vsel %vm292, %v286, -inf
        %294 = vmax.xlane.f32.xlu0 %v293
        %v295 = vpop.xlane.xlu0 %294
        %vm296 = vcmp.eq.f32.partialorder %v293, %v295
        %v297 = vsel %vm296, %v291, 512
        %v298 = vand.u32 %v297, 65535
        %v299 = vshra.s32 %v297, 16
        %v300 = vcvt.s32.f32 %v298
        %v301 = vcvt.s32.f32 %v299
        %302 = vmin.xlane.f32.xlu0 %v301
        %v303 = vpop.xlane.xlu0 %302
        %vm304 = vcmp.eq.f32.partialorder %v301, %v303
        %v305 = vsel %vm304, %v300, inf
        %306 = vmin.xlane.f32.xlu0 %v305
        %v307 = vpop.xlane.xlu0 %306
        %v308 = vcvt.f32.s32 %v307
        %v309 = vcvt.f32.s32 %v303
        %v310 = vshll.u32 %v309, 16
        %v311 = vadd.s32 %v310, %v308
        %v312 = vld [vmem:[#allocation2] sm:$0xff]
        %vm313 = vcmp.gt.f32.partialorder %v295, %v312
        %v314 = vsel %vm313, %v295, %v312
        %vm315 = vcmask 7168
        %316 = vst.msk [vmem:[#allocation2] sm:$0xff] %vm315, %v314
        %v317 = vld [vmem:[#allocation3] sm:$0xff]
        %v318 = vsel %vm313, %v311, %v317
        %319 = vst.msk [vmem:[#allocation3] sm:$0xff] %vm315, %v318
        %p320 = scmp.eq.s32.totalorder %s25, 3
        // Predicated region
        $region45: #{tpu_custom_call.1} parent=31 // pred_check
          %p321 = pneg %p320
        $region46: #{tpu_custom_call.1} parent=31 // pred_check_branch
          %323 = sbr.rel (%p321) target = $region48
        $region47: #{tpu_custom_call.1} parent=31 // pred_region
          %v324 = vld [vmem:[#allocation3] sm:$0xff]
          %325 = vst.msk [vmem:[%s259] sm:$0xff] %vm315, %v324
        $region48: #{tpu_custom_call.1} parent=31 // pred_fallthru
          _
        %p326 = scmp.lt.s32.totalorder %s24, 0
        %s327 = scalar_select %p326, %s24, 0
        %s328 = smul.addr %s327, 8
        %s329 = scalar_lea.vmem %s3, %s328
        // Predicated region
        $region49: #{tpu_custom_call.1} parent=31 // pred_check
          %p330 = pneg %p132
        $region50: #{tpu_custom_call.1} parent=31 // pred_check_branch
          %332 = sbr.rel (%p330) target = $region52
        $region51: #{tpu_custom_call.1} parent=31 // pred_region
          _
        $region52: #{tpu_custom_call.1} parent=31 // pred_fallthru
          _
        // Predicated region
        $region53: #{tpu_custom_call.1} parent=31 // pred_check
          %p333 = pneg %p132
        $region54: #{tpu_custom_call.1} parent=31 // pred_check_branch
          %335 = sbr.rel (%p333) target = $region56
        $region55: #{tpu_custom_call.1} parent=31 // pred_region
          %p336 = scmp.lt.s32.totalorder %s24, 0
          %s337 = scalar_select %p336, %s24, 0
          %s338 = smul.addr %s337, 8
          %s339 = scalar_lea.vmem %s3, %s338
        $region56: #{tpu_custom_call.1} parent=31 // pred_fallthru
          _
      $region32: #{tpu_custom_call.1} parent=5 // pred_fallthru
        _
      %p340 = scmp.le.s32.totalorder 2, %s15
      // Predicated region
      $region57: #{tpu_custom_call.1} parent=5 // pred_check
        %p341 = pneg %p340
      $region58: #{tpu_custom_call.1} parent=5 // pred_check_branch
        %343 = sbr.rel (%p341) target = $region60
      $region59: #{tpu_custom_call.1} parent=5 // pred_region
        %s344 = ssub.s32 %s15, 2
      $region60: #{tpu_custom_call.1} parent=5 // pred_fallthru
        _
    $region6: #{tpu_custom_call.1} parent=1 // loop_footer
      %s19 = sadd.s32 1, %s15
    $region7: #{tpu_custom_call.1} parent=1 // loop_footer_branch
      %14 = sbr.rel target = $region3
    $region8: #{tpu_custom_call.1} parent=1 // loop_exit
      _
    %345 = vsyncpa [#allocation5], 1
    %s346 = scalar_lea.sflag [#allocation5], 1
    %347 = vsyncpa %s346, 1
    %348 = vsyncpa [#allocation7], 1
    %s349 = scalar_lea.sflag [#allocation7], 1
    %350 = vsyncpa %s349, 1

</llo_original>
